<compile_context>
chip_gen: v7x
topology: tpu7x:2x2x1
jax: 0.10.0
libtpu: 0.0.40
codegen_flags: <defaults>
</compile_context>

<pallas_src>
import jax
import jax.numpy as jnp
from jax.experimental import pallas as pl
from jax.experimental.pallas import tpu as pltpu


def _round_up(x, m):
    return (x + m - 1) // m * m


def _choose_k_tile(d, tk_cap=512):
    """K tile size: <=512, 128-aligned, and the padded D is a multiple of it."""
    return min(tk_cap, _round_up(d, 128))


def _fused_linear_kernel(x_ref, w_ref, b_ref, out_ref, acc_ref):
    # x_ref: (tm, tk) bf16, w_ref: (tk, OUT_P) bf16, b_ref: (1, OUT_P) f32
    # out_ref: (tm, OUT_P) f32, acc_ref: (tm, OUT_P) f32 scratch
    k = pl.program_id(1)

    @pl.when(k == 0)
    def _():
        acc_ref[...] = jnp.zeros_like(acc_ref)

    acc_ref[...] += jnp.dot(x_ref[...], w_ref[...],
                            preferred_element_type=jnp.float32)

    @pl.when(k == pl.num_programs(1) - 1)
    def _():
        out_ref[...] = (acc_ref[...] + b_ref[...]).astype(out_ref.dtype)


def prepare_bbox_head_params(w_cls, b_cls, w_reg, b_reg,
                             compute_dtype=jnp.bfloat16, tk_cap=512):
    """One-time weight packing (do this at module init, not per forward).

    Args:
      w_cls: (num_classes, D)   fc_cls weight (PyTorch (out, in) layout).
      b_cls: (num_classes,)     fc_cls bias.
      w_reg: (reg_dim, D)       fc_reg weight (reg_dim = 4 or 4*num_classes).
      b_reg: (reg_dim,)         fc_reg bias.
    Returns:
      w_packed: (D_p, OUT_P) compute_dtype — concatenated, transposed, zero-padded.
      b_packed: (1, OUT_P) float32        — concatenated, zero-padded bias.
    """
    num_classes, d = w_cls.shape
    reg_dim = w_reg.shape[0]
    out_total = num_classes + reg_dim
    out_p = _round_up(out_total, 128)           # lane-dense output
    tk = _choose_k_tile(d, tk_cap)
    d_p = _round_up(d, tk)

    w = jnp.concatenate([w_cls, w_reg], axis=0)                     # (OUT, D)
    w = jnp.pad(w, ((0, out_p - out_total), (0, d_p - d)))          # zero pad
    w_packed = jnp.transpose(w).astype(compute_dtype)               # (D_p, OUT_P)

    b = jnp.concatenate([b_cls, b_reg], axis=0)
    b_packed = jnp.pad(b, (0, out_p - out_total)).reshape(1, out_p)
    b_packed = b_packed.astype(jnp.float32)
    return w_packed, b_packed


def bbox_head_forward(x_nchw, w_packed, b_packed, num_classes, reg_dim,
                      with_avg_pool=False, compute_dtype=jnp.bfloat16,
                      tm_cap=256, tk_cap=512):
    """Forward of BBoxHead (with_cls=True, with_reg=True).

    Args:
      x_nchw:   (N, C, H, W) RoI features.
      w_packed: (D_p, OUT_P) packed weights from prepare_bbox_head_params.
      b_packed: (1, OUT_P)   packed bias.
    Returns:
      (cls_score (N, num_classes), bbox_pred (N, reg_dim))
    """
    n = x_nchw.shape[0]
    if with_avg_pool:
        # nn.AvgPool2d(roi_feat_size) over the full spatial window == mean(H, W).
        x2d = jnp.mean(x_nchw, axis=(2, 3))
    else:
        # torch `x.view(x.size(0), -1)` on NCHW is a row-major flatten.
        x2d = x_nchw.reshape(n, -1)
    d = x2d.shape[1]
    d_p, out_p = w_packed.shape

    # Tile sizes (work for v5e/v6e/v7x; per-step VMEM ~3 MiB with tm=256, tk=512).
    tm = min(tm_cap, _round_up(n, 16))          # 16-row granule (bf16 sublane pack)
    n_p = _round_up(n, tm)
    tk = min(tk_cap, d_p)
    assert d_p % tk == 0

    x_pad = jnp.pad(x2d, ((0, n_p - n), (0, d_p - d))).astype(compute_dtype)

    grid = (n_p // tm, d_p // tk)
    out = pl.pallas_call(
        _fused_linear_kernel,
        out_shape=jax.ShapeDtypeStruct((n_p, out_p), jnp.float32),
        grid_spec=pltpu.PrefetchScalarGridSpec(
            num_scalar_prefetch=0,
            grid=grid,
            in_specs=[
                pl.BlockSpec((tm, tk), lambda i, k: (i, k)),       # x tile
                pl.BlockSpec((tk, out_p), lambda i, k: (k, 0)),    # weight tile
                pl.BlockSpec((1, out_p), lambda i, k: (0, 0)),     # bias
            ],
            out_specs=pl.BlockSpec((tm, out_p), lambda i, k: (i, 0)),
            scratch_shapes=[pltpu.VMEM((tm, out_p), jnp.float32)],
        ),
        compiler_params=pltpu.CompilerParams(
            dimension_semantics=("parallel", "arbitrary")),
    )(x_pad, w_packed, b_packed)

    cls_score = out[:n, :num_classes]
    bbox_pred = out[:n, num_classes:num_classes + reg_dim]
    return cls_score, bbox_pred


if __name__ == "__main__":
    # Small synthetic config: in_channels=16, roi_feat_size=4 -> D = 256,
    # num_classes=8, reg_class_agnostic=False -> reg out dim = 32, N=8 RoIs.
    key = jax.random.PRNGKey(0)
    k_x, k_wc, k_wr = jax.random.split(key, 3)

    N, C, H, W = 8, 16, 4, 4
    D = C * H * W
    num_classes = 8
    reg_dim = 4 * num_classes

    x = jax.random.normal(k_x, (N, C, H, W), dtype=jnp.float32)

    # init_weights(): cls ~ N(0, 0.01), reg ~ N(0, 0.001), biases = 0.
    w_cls = 0.01 * jax.random.normal(k_wc, (num_classes, D), dtype=jnp.float32)
    b_cls = jnp.zeros((num_classes,), dtype=jnp.float32)
    w_reg = 0.001 * jax.random.normal(k_wr, (reg_dim, D), dtype=jnp.float32)
    b_reg = jnp.zeros((reg_dim,), dtype=jnp.float32)

    # One-time weight packing (init-time), then the per-call forward.
    w_packed, b_packed = prepare_bbox_head_params(w_cls, b_cls, w_reg, b_reg)
    cls_score, bbox_pred = bbox_head_forward(
        x, w_packed, b_packed, num_classes, reg_dim)
    jax.block_until_ready((cls_score, bbox_pred))

    # Reference check in plain JAX (same math as torch nn.Linear on the flatten).
    x2d = x.reshape(N, D)
    ref_cls = x2d @ w_cls.T + b_cls
    ref_reg = x2d @ w_reg.T + b_reg
    assert cls_score.shape == (N, num_classes)
    assert bbox_pred.shape == (N, reg_dim)
    # bf16 operands + f32 accumulation => relaxed tolerance vs f32 reference.
    assert jnp.allclose(cls_score, ref_cls, atol=1e-2, rtol=2e-2)
    assert jnp.allclose(bbox_pred, ref_reg, atol=1e-2, rtol=2e-2)

    # TODO(synk): loss()/get_target()/get_det_bboxes()/refine_bboxes() depend on
    # external mmdet ops (bbox_target, delta2bbox, multiclass_nms) and are not
    # part of forward(); not kernelized.
    print("KERNEL_OK")
</pallas_src>

<mosaic_0001>
module attributes {stable_mosaic.version = 11 : i64} {
  func.func @_fused_linear_kernel(%arg0: i32, %arg1: i32, %arg2: memref<16x256xbf16, #tpu.memory_space<vmem>>, %arg3: memref<256x128xbf16, #tpu.memory_space<vmem>>, %arg4: memref<1x128xf32, #tpu.memory_space<vmem>>, %arg5: memref<16x128xf32, #tpu.memory_space<vmem>>, %arg6: memref<16x128xf32, #tpu.memory_space<vmem>>) attributes {dimension_semantics = [#tpu.dimension_semantics<parallel>, #tpu.dimension_semantics<arbitrary>], iteration_bounds = array<i64: 1, 1>, scalar_prefetch = 0 : i64, scratch_operands = 1 : i64, tpu.core_type = #tpu.core_type<tc>, window_params = [{transform_indices = @transform_0, window_bounds = array<i64: 16, 256>}, {transform_indices = @transform_1, window_bounds = array<i64: 256, 128>}, {pipeline_mode = #tpu.pipeline_mode<synchronous>, transform_indices = @transform_2, window_bounds = array<i64: 1, 128>}, {transform_indices = @transform_3, window_bounds = array<i64: 16, 128>}]} {
    %c0_i32 = arith.constant 0 : i32
    %0 = arith.cmpi eq, %arg1, %c0_i32 : i32
    %1 = arith.extui %0 : i1 to i32
    %c0_i32_0 = arith.constant 0 : i32
    %2 = arith.cmpi ne, %1, %c0_i32_0 : i32
    scf.if %2 {
      %cst_10 = arith.constant 0.000000e+00 : f32
      %12 = vector.broadcast %cst_10 : f32 to vector<16x128xf32>
      %c0_11 = arith.constant 0 : index
      %c0_12 = arith.constant 0 : index
      %13 = vector.load %arg6[%c0_11, %c0_12] : memref<16x128xf32, #tpu.memory_space<vmem>>, vector<16x128xf32>
      tpu.vector_store %arg6[%c0_11, %c0_12], %12 {strides = array<i32>} : memref<16x128xf32, #tpu.memory_space<vmem>>, vector<16x128xf32>,
    } else {
    }
    %c0 = arith.constant 0 : index
    %c0_1 = arith.constant 0 : index
    %3 = vector.load %arg6[%c0, %c0_1] : memref<16x128xf32, #tpu.memory_space<vmem>>, vector<16x128xf32>
    %c0_2 = arith.constant 0 : index
    %c0_3 = arith.constant 0 : index
    %4 = vector.load %arg2[%c0_2, %c0_3] : memref<16x256xbf16, #tpu.memory_space<vmem>>, vector<16x256xbf16>
    %c0_4 = arith.constant 0 : index
    %c0_5 = arith.constant 0 : index
    %5 = vector.load %arg3[%c0_4, %c0_5] : memref<256x128xbf16, #tpu.memory_space<vmem>>, vector<256x128xbf16>
    %cst = arith.constant dense<0.000000e+00> : vector<16x128xf32>
    %6 = tpu.matmul %4, %5, %cst {dimension_numbers = #tpu.dot_dimension_numbers<[1], [0], [0], [1], [0, 0, 1, 1], [], []>} : vector<16x256xbf16>, vector<256x128xbf16>, vector<16x128xf32> -> vector<16x128xf32>
    %7 = arith.addf %3, %6 : vector<16x128xf32>
    %c0_6 = arith.constant 0 : index
    %c0_7 = arith.constant 0 : index
    %8 = vector.load %arg6[%c0_6, %c0_7] : memref<16x128xf32, #tpu.memory_space<vmem>>, vector<16x128xf32>
    tpu.vector_store %arg6[%c0_6, %c0_7], %7 {strides = array<i32>} : memref<16x128xf32, #tpu.memory_space<vmem>>, vector<16x128xf32>,
    %c0_i32_8 = arith.constant 0 : i32
    %9 = arith.cmpi eq, %arg1, %c0_i32_8 : i32
    %10 = arith.extui %9 : i1 to i32
    %c0_i32_9 = arith.constant 0 : i32
    %11 = arith.cmpi ne, %10, %c0_i32_9 : i32
    scf.if %11 {
      %c0_10 = arith.constant 0 : index
      %c0_11 = arith.constant 0 : index
      %12 = vector.load %arg6[%c0_10, %c0_11] : memref<16x128xf32, #tpu.memory_space<vmem>>, vector<16x128xf32>
      %c0_12 = arith.constant 0 : index
      %c0_13 = arith.constant 0 : index
      %13 = vector.load %arg4[%c0_12, %c0_13] : memref<1x128xf32, #tpu.memory_space<vmem>>, vector<1x128xf32>
      %14 = vector.broadcast %13 : vector<1x128xf32> to vector<16x128xf32>
      %15 = arith.addf %12, %14 : vector<16x128xf32>
      %c0_14 = arith.constant 0 : index
      %c0_15 = arith.constant 0 : index
      %16 = vector.load %arg5[%c0_14, %c0_15] : memref<16x128xf32, #tpu.memory_space<vmem>>, vector<16x128xf32>
      tpu.vector_store %arg5[%c0_14, %c0_15], %15 {strides = array<i32>} : memref<16x128xf32, #tpu.memory_space<vmem>>, vector<16x128xf32>,
    } else {
    }
    return
  }
  func.func @transform_0(%arg0: i32, %arg1: i32) -> (i32, i32) {
    %c0_i32 = arith.constant 0 : i32
    return %arg0, %arg1 : i32, i32
  }
  func.func @transform_1(%arg0: i32, %arg1: i32) -> (i32, i32) {
    %c0_i32 = arith.constant 0 : i32
    %c0_i32_0 = arith.constant 0 : i32
    return %arg1, %c0_i32 : i32, i32
  }
  func.func @transform_2(%arg0: i32, %arg1: i32) -> (i32, i32) {
    %c0_i32 = arith.constant 0 : i32
    %c0_i32_0 = arith.constant 0 : i32
    %c0_i32_1 = arith.constant 0 : i32
    return %c0_i32, %c0_i32_0 : i32, i32
  }
  func.func @transform_3(%arg0: i32, %arg1: i32) -> (i32, i32) {
    %c0_i32 = arith.constant 0 : i32
    %c0_i32_0 = arith.constant 0 : i32
    return %arg0, %c0_i32 : i32, i32
  }
}

</mosaic_0001>

<llo_original>
// kernel: tpu_custom_call.1
$region0: #{tpu_custom_call.1}
  #allocation0 [shape = 'u32[]', space=smem, size = 0x4, offset = 0x4, fixed_abs, tag = 'smem constant byte address 0x4 - core index']
  #allocation1 [shape = 'u32[144,128]{1,0:T(1,128)}', space=vmem, size = 0x12000, scoped, tag = 'internal scratch']
  #allocation2 [shape = 'f32[16,128]{1,0:T(8,128)}', space=vmem, size = 0x2000, scoped, tag = 'scratch operand']
  %s0 = inlined_call_operand.hbm [shape: bf16[16,256], index: 0, kind: input, shape index: {}]
  %s1 = inlined_call_operand.hbm [shape: bf16[256,128], index: 1, kind: input, shape index: {}]
  %s2 = inlined_call_operand.vmem [shape: f32[1,128], index: 2, kind: input, shape index: {}]
  %s3 = inlined_call_operand.hbm [shape: f32[16,128], index: 3, kind: output, shape index: {}]
  %s4 = sld [smem:[#allocation0]]
  $region38: #{tpu_custom_call.1} parent=0
    _
  %s6 = ssub.s32 1, %s4
  %s7 = scalar_select 0, %s6, %s4
  $region1: #{tpu_custom_call.1} parent=0
    #allocation3 [shape = 'u8[8192]{0}', space=vmem, size = 0x2000, scoped, tag = 'input window, operand 0, single buffered']
    #allocation4 [shape = 's32[1]{0}', space=sflag, size = 0x4, scoped, tag = 'scoped memory for tpu_custom_call.1']
    #allocation5 [shape = 's32[1]{0}', space=sflag, size = 0x4, scoped, tag = 'scoped memory for tpu_custom_call.1']
    #allocation6 [shape = 'u8[65536]{0}', space=vmem, size = 0x10000, scoped, tag = 'input window, operand 1, single buffered']
    #allocation7 [shape = 's32[1]{0}', space=sflag, size = 0x4, scoped, tag = 'scoped memory for tpu_custom_call.1']
    #allocation8 [shape = 'u8[8192]{0}', space=vmem, size = 0x2000, scoped, tag = 'output window, operand 0, single buffered']
    %8 = vsyncpa [#allocation4], 0
    %9 = vsyncpa [#allocation7], 0
    %10 = vsyncpa [#allocation5], 0
    // Predicated region
    $region2: #{tpu_custom_call.1} parent=1 // pred_check
      _
    $region3: #{tpu_custom_call.1} parent=1 // pred_check_branch
      %12 = sbr.rel (0) target = $region5
    $region4: #{tpu_custom_call.1} parent=1 // pred_region
      %s14 = ssub.s32 256, 256
      %15 = vsyncadd [#allocation4], %s14
      %s16 = sshll.u32 [#allocation3], 4
      %s17 = int_to_ptr.vmem [resolvable:$true] %s16
      %22 = dma.hbm_to_vmem [thread:$0]  %s0, 256, %s17, [#allocation4], 128, 128, 8
    $region5: #{tpu_custom_call.1} parent=1 // pred_fallthru
      _
    // Predicated region
    $region6: #{tpu_custom_call.1} parent=1 // pred_check
      _
    $region7: #{tpu_custom_call.1} parent=1 // pred_check_branch
      %24 = sbr.rel (0) target = $region9
    $region8: #{tpu_custom_call.1} parent=1 // pred_region
      %s26 = ssub.s32 2048, 2048
      %27 = vsyncadd [#allocation7], %s26
      %s28 = sshll.u32 [#allocation6], 4
      %s29 = int_to_ptr.vmem [resolvable:$true] %s28
      %34 = dma.hbm_to_vmem [thread:$0]  %s1, 2048, %s29, [#allocation7], 64, 64, 4
    $region9: #{tpu_custom_call.1} parent=1 // pred_fallthru
      _
    // Predicated region
    $region10: #{tpu_custom_call.1} parent=1 // pred_check
      _
    $region11: #{tpu_custom_call.1} parent=1 // pred_check_branch
      %36 = sbr.rel (0) target = $region13
    $region12: #{tpu_custom_call.1} parent=1 // pred_region
      _
    $region13: #{tpu_custom_call.1} parent=1 // pred_fallthru
      _
    // Predicated region
    $region14: #{tpu_custom_call.1} parent=1 // pred_check
      _
    $region15: #{tpu_custom_call.1} parent=1 // pred_check_branch
      %38 = sbr.rel (0) target = $region17
    $region16: #{tpu_custom_call.1} parent=1 // pred_region
      %39 = dma.done [#allocation4], 256
    $region17: #{tpu_custom_call.1} parent=1 // pred_fallthru
      _
    // Predicated region
    $region18: #{tpu_custom_call.1} parent=1 // pred_check
      _
    $region19: #{tpu_custom_call.1} parent=1 // pred_check_branch
      %41 = sbr.rel (0) target = $region21
    $region20: #{tpu_custom_call.1} parent=1 // pred_region
      %42 = dma.done [#allocation7], 2048
    $region21: #{tpu_custom_call.1} parent=1 // pred_fallthru
      _
    %p44 = scmp.eq.s32.totalorder 0, 0
    // Predicated region
    $region22: #{tpu_custom_call.1} parent=1 // pred_check
      %p45 = pneg %p44
    $region23: #{tpu_custom_call.1} parent=1 // pred_check_branch
      %47 = sbr.rel (%p45) target = $region25
    $region24: #{tpu_custom_call.1} parent=1 // pred_region
      %48 = vst [vmem:[#allocation2] sm:$0xff] 0.0
      %49 = vst [vmem:[#allocation2 + $0x8] sm:$0xff] 0.0
    $region25: #{tpu_custom_call.1} parent=1 // pred_fallthru
      _
    %v50 = vld [vmem:[#allocation2] sm:$0xff]
    %v51 = vld [vmem:[#allocation2 + $0x8] sm:$0xff]
    %v52 = vld [vmem:[#allocation3] sm:$0xff]
    %v53 = vld [vmem:[#allocation3 + $0x8] sm:$0xff]
    %v54 = vld [vmem:[#allocation6] sm:$0xf]
    %v55 = vld [vmem:[#allocation6 + $0x4] sm:$0xf]
    %v56 = vld [vmem:[#allocation6 + $0x8] sm:$0xf]
    %v57 = vld [vmem:[#allocation6 + $0xc] sm:$0xf]
    %v58 = vld [vmem:[#allocation6 + $0x10] sm:$0xf]
    %v59 = vld [vmem:[#allocation6 + $0x14] sm:$0xf]
    %v60 = vld [vmem:[#allocation6 + $0x18] sm:$0xf]
    %v61 = vld [vmem:[#allocation6 + $0x1c] sm:$0xf]
    %v62 = vld [vmem:[#allocation6 + $0x20] sm:$0xf]
    %v63 = vld [vmem:[#allocation6 + $0x24] sm:$0xf]
    %v64 = vld [vmem:[#allocation6 + $0x28] sm:$0xf]
    %v65 = vld [vmem:[#allocation6 + $0x2c] sm:$0xf]
    %v66 = vld [vmem:[#allocation6 + $0x30] sm:$0xf]
    %v67 = vld [vmem:[#allocation6 + $0x34] sm:$0xf]
    %v68 = vld [vmem:[#allocation6 + $0x38] sm:$0xf]
    %v69 = vld [vmem:[#allocation6 + $0x3c] sm:$0xf]
    %v70 = vld [vmem:[#allocation6 + $0x40] sm:$0xf]
    %v71 = vld [vmem:[#allocation6 + $0x44] sm:$0xf]
    %v72 = vld [vmem:[#allocation6 + $0x48] sm:$0xf]
    %v73 = vld [vmem:[#allocation6 + $0x4c] sm:$0xf]
    %v74 = vld [vmem:[#allocation6 + $0x50] sm:$0xf]
    %v75 = vld [vmem:[#allocation6 + $0x54] sm:$0xf]
    %v76 = vld [vmem:[#allocation6 + $0x58] sm:$0xf]
    %v77 = vld [vmem:[#allocation6 + $0x5c] sm:$0xf]
    %v78 = vld [vmem:[#allocation6 + $0x60] sm:$0xf]
    %v79 = vld [vmem:[#allocation6 + $0x64] sm:$0xf]
    %v80 = vld [vmem:[#allocation6 + $0x68] sm:$0xf]
    %v81 = vld [vmem:[#allocation6 + $0x6c] sm:$0xf]
    %v82 = vld [vmem:[#allocation6 + $0x70] sm:$0xf]
    %v83 = vld [vmem:[#allocation6 + $0x74] sm:$0xf]
    %v84 = vld [vmem:[#allocation6 + $0x78] sm:$0xf]
    %v85 = vld [vmem:[#allocation6 + $0x7c] sm:$0xf]
    %v88 = vunpack.c.l.b16 %v52
    %v89 = vunpack.c.h.b16 %v52
    %v90 = vunpack.c.l.b16 %v53
    %v91 = vunpack.c.h.b16 %v53
    %v92 = vpack.c.b16 %v90, %v88
    %v93 = vpack.c.b16 %v91, %v89
    %v128 = vunpack.c.l.b16 %v54
    %v129 = vunpack.c.l.b16 %v55
    %v130 = vunpack.c.l.b16 %v56
    %v131 = vunpack.c.l.b16 %v57
    %v132 = vunpack.c.l.b16 %v58
    %v133 = vunpack.c.l.b16 %v59
    %v134 = vunpack.c.l.b16 %v60
    %v135 = vunpack.c.l.b16 %v61
    %v136 = vunpack.c.l.b16 %v62
    %v137 = vunpack.c.l.b16 %v63
    %v138 = vunpack.c.l.b16 %v64
    %v139 = vunpack.c.l.b16 %v65
    %v140 = vunpack.c.l.b16 %v66
    %v141 = vunpack.c.l.b16 %v67
    %v142 = vunpack.c.l.b16 %v68
    %v143 = vunpack.c.l.b16 %v69
    %v144 = vunpack.c.l.b16 %v70
    %v145 = vunpack.c.l.b16 %v71
    %v146 = vunpack.c.l.b16 %v72
    %v147 = vunpack.c.l.b16 %v73
    %v148 = vunpack.c.l.b16 %v74
    %v149 = vunpack.c.l.b16 %v75
    %v150 = vunpack.c.l.b16 %v76
    %v151 = vunpack.c.l.b16 %v77
    %v152 = vunpack.c.l.b16 %v78
    %v153 = vunpack.c.l.b16 %v79
    %v154 = vunpack.c.l.b16 %v80
    %v155 = vunpack.c.l.b16 %v81
    %v156 = vunpack.c.l.b16 %v82
    %v157 = vunpack.c.l.b16 %v83
    %v158 = vunpack.c.l.b16 %v84
    %v159 = vunpack.c.l.b16 %v85
    %v160 = vpack.c.b16 %v129, %v128
    %v161 = vpack.c.b16 %v131, %v130
    %v162 = vpack.c.b16 %v133, %v132
    %v163 = vpack.c.b16 %v135, %v134
    %v164 = vpack.c.b16 %v137, %v136
    %v165 = vpack.c.b16 %v139, %v138
    %v166 = vpack.c.b16 %v141, %v140
    %v167 = vpack.c.b16 %v143, %v142
    %v168 = vpack.c.b16 %v145, %v144
    %v169 = vpack.c.b16 %v147, %v146
    %v170 = vpack.c.b16 %v149, %v148
    %v171 = vpack.c.b16 %v151, %v150
    %v172 = vpack.c.b16 %v153, %v152
    %v173 = vpack.c.b16 %v155, %v154
    %v174 = vpack.c.b16 %v157, %v156
    %v175 = vpack.c.b16 %v159, %v158
    %192 = vmatprep.subr.bf16.mxu0 0
    %193 = vmatpush1.bf16.msra.mxu0 %v160
    %194 = vmatprep.subr.bf16.mxu0 0
    %195 = vmatpush1.bf16.msra.mxu0 %v161
    %196 = vmatprep.subr.bf16.mxu0 0
    %197 = vmatpush1.bf16.msra.mxu0 %v162
    %198 = vmatprep.subr.bf16.mxu0 0
    %199 = vmatpush1.bf16.msra.mxu0 %v163
    %200 = vmatprep.subr.bf16.mxu0 0
    %201 = vmatpush1.bf16.msra.mxu0 %v164
    %202 = vmatprep.subr.bf16.mxu0 0
    %203 = vmatpush1.bf16.msra.mxu0 %v165
    %204 = vmatprep.subr.bf16.mxu0 0
    %205 = vmatpush1.bf16.msra.mxu0 %v166
    %206 = vmatprep.subr.bf16.mxu0 0
    %207 = vmatpush1.bf16.msra.mxu0 %v167
    %208 = vmatprep.subr.bf16.mxu0 0
    %209 = vmatpush1.bf16.msra.mxu0 %v168
    %210 = vmatprep.subr.bf16.mxu0 0
    %211 = vmatpush1.bf16.msra.mxu0 %v169
    %212 = vmatprep.subr.bf16.mxu0 0
    %213 = vmatpush1.bf16.msra.mxu0 %v170
    %214 = vmatprep.subr.bf16.mxu0 0
    %215 = vmatpush1.bf16.msra.mxu0 %v171
    %216 = vmatprep.subr.bf16.mxu0 0
    %217 = vmatpush1.bf16.msra.mxu0 %v172
    %218 = vmatprep.subr.bf16.mxu0 0
    %219 = vmatpush1.bf16.msra.mxu0 %v173
    %220 = vmatprep.subr.bf16.mxu0 0
    %221 = vmatpush1.bf16.msra.mxu0 %v174
    %222 = vmatprep.subr.bf16.mxu0 0
    %223 = vmatpush1.bf16.msra.mxu0 %v175
    %224 = vmatprep.mubr.bf16.mxu0 %v93
    %225 = vmatmul.mubr.bf16.gmra.mrb[0].mxu0 %v92
    %v226 = vpop.f32.mrb[0].mxu0
    %v227 = vadd.f32 0.0, %v226
    %v228 = vpop.f32.mrb[0].mxu0
    %v229 = vpop.f32.mrb[0].mxu0
    %v230 = vadd.f32 0.0, %v229
    %v231 = vpop.f32.mrb[0].mxu0
    %232 = vdwg.mxu0
    %v233 = vadd.f32 %v50, %v227
    %v234 = vadd.f32 %v51, %v230
    %235 = vst [vmem:[#allocation2] sm:$0xff] %v233
    %236 = vst [vmem:[#allocation2 + $0x8] sm:$0xff] %v234
    // Predicated region
    $region26: #{tpu_custom_call.1} parent=1 // pred_check
      %p237 = pneg %p44
    $region27: #{tpu_custom_call.1} parent=1 // pred_check_branch
      %239 = sbr.rel (%p237) target = $region29
    $region28: #{tpu_custom_call.1} parent=1 // pred_region
      %v240 = vld [vmem:[#allocation2] sm:$0xff]
      %v241 = vld [vmem:[#allocation2 + $0x8] sm:$0xff]
      %v242 = vld [vmem:[%s2] sm:$0x1]
      %v244 = vlaneseq
      %v245 = vshrl.u32 %v244, 7
      %v246 = vsub.s32 0, %v245
      %v247 = vrot.slane %v242, %v246
      %v249 = vadd.f32 %v240, %v247
      %v250 = vadd.f32 %v241, %v247
      %251 = vst [vmem:[#allocation8] sm:$0xff] %v249
      %252 = vst [vmem:[#allocation8 + $0x8] sm:$0xff] %v250
    $region29: #{tpu_custom_call.1} parent=1 // pred_fallthru
      _
    // Predicated region
    $region30: #{tpu_custom_call.1} parent=1 // pred_check
      _
    $region31: #{tpu_custom_call.1} parent=1 // pred_check_branch
      %254 = sbr.rel (0) target = $region33
    $region32: #{tpu_custom_call.1} parent=1 // pred_region
      %s256 = ssub.s32 256, 256
      %257 = vsyncadd [#allocation5], %s256
      %s258 = sshll.u32 [#allocation8], 4
      %s259 = int_to_ptr.vmem [resolvable:$true] %s258
      %264 = dma.vmem_to_hbm [thread:$0]  %s259, 256, %s3, [#allocation5], 128, 128, 8
    $region33: #{tpu_custom_call.1} parent=1 // pred_fallthru
      _
    // Predicated region
    $region34: #{tpu_custom_call.1} parent=1 // pred_check
      _
    $region35: #{tpu_custom_call.1} parent=1 // pred_check_branch
      %266 = sbr.rel (0) target = $region37
    $region36: #{tpu_custom_call.1} parent=1 // pred_region
      %267 = dma.done [#allocation5], 256
    $region37: #{tpu_custom_call.1} parent=1 // pred_fallthru
      _
    %268 = vsyncpa [#allocation4], 1
    %269 = vsyncpa [#allocation7], 1
    %270 = vsyncpa [#allocation5], 1

</llo_original>
